<compile_context>
chip_gen: v6e
topology: v6e:2x2x1
jax: 0.10.0
libtpu: 0.0.40
codegen_flags: <defaults>
</compile_context>

<pallas_src>
import functools

import jax
import jax.numpy as jnp
from jax import lax
from jax.experimental import pallas as pl
from jax.experimental.pallas import tpu as pltpu


def _round_up(x, m):
    return ((x + m - 1) // m) * m


def _log_sigmoid(x):
    # Numerically-stable logsigmoid: min(x,0) - log(1+exp(-|x|)).
    # min/abs/add on the VPU, exp/log on the EUP.
    return jnp.minimum(x, 0.0) - jnp.log(1.0 + jnp.exp(-jnp.abs(x)))


def _sigmoid_loss_kernel(sim_ref, *rest,
                         batch, num_neg, block_batch, inner, total_tiles,
                         pos_gamma, neg_gamma, adv_temperature,
                         small_better, big_better, sub, add,
                         adv_flag, has_sw, needs_row_mask):
    if has_sw:
        sw_ref, out_ref, acc_ref = rest
    else:
        out_ref, acc_ref = rest

    i = pl.program_id(1)

    @pl.when(i == 0)
    def _init():
        acc_ref[0] = jnp.float32(0.0)   # sum_b w_b * logsigmoid(p_b)
        acc_ref[1] = jnp.float32(0.0)   # sum_b w_b * negative_score_b
        acc_ref[2] = jnp.float32(0.0)   # sum_b w_b (only meaningful if has_sw)

    x = sim_ref[...].astype(jnp.float32)          # [TB, C], cast after DMA
    tb, cols = x.shape

    row_ok = None
    if needs_row_mask:
        tile_lin = pl.program_id(0) * inner + i
        base = jnp.minimum(tile_lin, total_tiles - 1) * block_batch
        row_ids = base + lax.broadcasted_iota(jnp.int32, (tb, 1), 0)
        row_ok = (row_ids < batch) & (tile_lin < total_tiles)     # [TB, 1]
        # Kill any garbage (NaN/Inf) in padded / phantom rows BEFORE the
        # nonlinearities so downstream 0-weighting cannot turn into NaN.
        x = jnp.where(row_ok, x, 0.0)

    p = x[:, 0:1]                                  # positives: lane-offset-0 slice
    n = x                                          # negatives live in cols >= 1

    # Sequential margin transforms — mirrors the PyTorch `if` chain (not elif).
    if small_better:
        p, n = pos_gamma - p, neg_gamma - n
    if big_better:
        p, n = p - pos_gamma, n - neg_gamma
    if sub:
        p, n = pos_gamma - p, neg_gamma - n
    if add:
        p, n = pos_gamma + p, neg_gamma + n

    neg_col = lax.broadcasted_iota(jnp.int32, (tb, cols), 1) >= 1
    logsig_neg = _log_sigmoid(-n)                  # [TB, C]; col 0 masked below

    if adv_flag:
        # softmax(n * adv_t) over the negative columns only.  Column 0 is
        # masked to -inf BEFORE the row max, so exp(logits - m) is exactly 1
        # at the row-max column and the denominator is >= 1 (no underflow /
        # divide-by-zero even when every real logit is strongly negative).
        logits = jnp.where(neg_col, n * adv_temperature, -jnp.inf)
        m = jnp.max(logits, axis=1, keepdims=True)
        e = jnp.exp(logits - m)                    # col 0 -> exp(-inf) = 0
        denom = jnp.sum(e, axis=1, keepdims=True)  # >= 1
        # EUP approximate reciprocal (~1e-4 rel err) frees the VPU divide.
        neg_score = (jnp.sum(e * logsig_neg, axis=1, keepdims=True) *
                     pl.reciprocal(denom, approx=True))
    else:
        neg_score = (jnp.sum(jnp.where(neg_col, logsig_neg, 0.0),
                             axis=1, keepdims=True) * (1.0 / num_neg))

    pos_score = _log_sigmoid(p)                    # [TB, 1]

    if has_sw:
        w = sw_ref[...]                            # [TB, 1] f32
        if needs_row_mask:
            w = jnp.where(row_ok, w, 0.0)
        acc_ref[2] = acc_ref[2] + jnp.sum(w)
    elif needs_row_mask:
        w = row_ok.astype(jnp.float32)
    else:
        w = None

    if w is not None:
        pos_part = jnp.sum(w * pos_score)
        neg_part = jnp.sum(w * neg_score)
    else:
        pos_part = jnp.sum(pos_score)
        neg_part = jnp.sum(neg_score)

    acc_ref[0] = acc_ref[0] + pos_part
    acc_ref[1] = acc_ref[1] + neg_part

    @pl.when(i == inner - 1)
    def _finalize():
        # Pack the three partial sums into lanes 0..2 of sublane 0 of this
        # chunk's (8, 128) output block (a full-block, aligned store).
        lane = lax.broadcasted_iota(jnp.int32, (8, 128), 1)
        sl = lax.broadcasted_iota(jnp.int32, (8, 128), 0)
        row0 = sl == 0
        blk = jnp.where(row0 & (lane == 0), acc_ref[0], 0.0)
        blk = jnp.where(row0 & (lane == 1), acc_ref[1], blk)
        blk = jnp.where(row0 & (lane == 2), acc_ref[2], blk)
        out_ref[...] = blk


def sigmoid_loss(similarity,
                 subsampling_weight=None,
                 *,
                 pos_gamma,
                 neg_gamma,
                 adv_temperature=None,
                 small_better=False,
                 big_better=False,
                 sub=False,
                 add=False,
                 block_batch=None):
    """Pallas implementation of SigmoidLoss.forward. Returns (loss, loss_record)."""
    B, C = similarity.shape
    assert C >= 2, "similarity must be [batch, 1 + num_negatives]"
    num_neg = C - 1
    adv_flag = adv_temperature is not None
    has_sw = subsampling_weight is not None

    isz = jnp.dtype(similarity.dtype).itemsize
    row_vmem = _round_up(C, 128) * isz            # per-row VMEM footprint of a tile

    try:
        vmem_cap = int(pltpu.get_tpu_info().vmem_capacity_bytes)
    except Exception:
        vmem_cap = 64 << 20                       # assume the smallest (v7x)
    # Double-buffered budget for the similarity stream: tighter on v7x (64 MiB
    # physical VMEM), roomier on v5e/v6e (128 MiB).
    pair_budget = (24 << 20) if vmem_cap > (64 << 20) else (16 << 20)

    if block_batch is None:
        tb = min(_round_up(B, 8), 8192)           # cap raised from 512 -> big DMAs
        while tb > 8 and 2 * tb * row_vmem > pair_budget:
            tb = _round_up(tb // 2, 8)
        block_batch = max(tb, 8)
    else:
        block_batch = max(_round_up(block_batch, 8), 8)

    total_tiles = -(-B // block_batch)
    # v7x dual-TensorCore: leading "parallel" axis of size 2 splits the batch
    # tiles between the cores; on 1-TC chips it just iterates sequentially.
    num_chunks = 2 if total_tiles >= 2 else 1
    inner = -(-total_tiles // num_chunks)
    needs_row_mask = (num_chunks * inner * block_batch) != B

    def tile_map(c, i):
        # Clamp phantom tiles (odd tile counts) to the last real tile; they are
        # fully masked out in-kernel.
        return (jnp.minimum(c * inner + i, total_tiles - 1), 0)

    inputs = [similarity]                         # fed directly, native dtype
    in_specs = [pl.BlockSpec((block_batch, C), tile_map)]
    if has_sw:
        sw = jnp.reshape(subsampling_weight, (B, 1)).astype(jnp.float32)
        inputs.append(sw)
        in_specs.append(pl.BlockSpec((block_batch, 1), tile_map))

    # Explicit VMEM budget: double-buffered streams + tiny output blocks, with
    # headroom, clamped to this generation's physical VMEM capacity.
    stream = 2 * block_batch * row_vmem
    if has_sw:
        stream += 2 * block_batch * 128 * 4       # lane-padded thin column
    stream += 2 * 8 * 128 * 4                     # output blocks
    vmem_limit = int(stream * 1.5) + (4 << 20)
    vmem_limit = max(16 << 20, min(vmem_limit, vmem_cap - (16 << 20)))

    kernel = functools.partial(
        _sigmoid_loss_kernel,
        batch=B, num_neg=num_neg, block_batch=block_batch,
        inner=inner, total_tiles=total_tiles,
        pos_gamma=float(pos_gamma), neg_gamma=float(neg_gamma),
        adv_temperature=float(adv_temperature) if adv_flag else 0.0,
        small_better=small_better, big_better=big_better, sub=sub, add=add,
        adv_flag=adv_flag, has_sw=has_sw, needs_row_mask=needs_row_mask)

    out = pl.pallas_call(
        kernel,
        out_shape=jax.ShapeDtypeStruct((num_chunks * 8, 128), jnp.float32),
        grid_spec=pltpu.PrefetchScalarGridSpec(
            num_scalar_prefetch=0,
            grid=(num_chunks, inner),
            in_specs=in_specs,
            out_specs=pl.BlockSpec((8, 128), lambda c, i: (c, 0)),
            scratch_shapes=[pltpu.SMEM((3,), jnp.float32)]),
        compiler_params=pltpu.CompilerParams(
            dimension_semantics=("parallel", "arbitrary"),
            vmem_limit_bytes=vmem_limit),
    )(*inputs)

    # Combine the per-chunk partial sums (a handful of scalar XLA ops).
    parts = out.reshape(num_chunks, 8, 128)[:, 0, :3]     # (chunks, 3)
    pos_sum = jnp.sum(parts[:, 0])
    neg_sum = jnp.sum(parts[:, 1])
    norm = jnp.sum(parts[:, 2]) if has_sw else jnp.float32(B)
    pos_loss = -pos_sum / norm
    neg_loss = -neg_sum / norm
    loss = 0.5 * (pos_loss + neg_loss)
    # Device scalars (no blocking host syncs) -> sigmoid_loss is jit-friendly.
    loss_record = {
        'hard_positive_sample_loss': pos_loss,
        'hard_negative_sample_loss': neg_loss,
        'hard_loss': loss,
    }
    return loss, loss_record


def _reference(similarity, sw, pos_gamma, neg_gamma, adv_temperature,
               small_better=False, big_better=False, sub=False, add=False):
    # Pure-JAX reference mirroring the PyTorch forward.
    p = similarity[:, 0]
    n = similarity[:, 1:]
    if small_better:
        p, n = pos_gamma - p, neg_gamma - n
    if big_better:
        p, n = p - pos_gamma, n - neg_gamma
    if sub:
        p, n = pos_gamma - p, neg_gamma - n
    if add:
        p, n = pos_gamma + p, neg_gamma + n
    if adv_temperature is not None:
        w_soft = jax.nn.softmax(n * adv_temperature, axis=1)
        neg = jnp.sum(w_soft * jax.nn.log_sigmoid(-n), axis=1)
    else:
        neg = jnp.mean(jax.nn.log_sigmoid(-n), axis=1)
    pos = jax.nn.log_sigmoid(p)
    if sw is None:
        pos_loss = -jnp.mean(pos)
        neg_loss = -jnp.mean(neg)
    else:
        w = sw.reshape(-1)
        pos_loss = -jnp.sum(w * pos) / jnp.sum(w)
        neg_loss = -jnp.sum(w * neg) / jnp.sum(w)
    return (pos_loss + neg_loss) / 2


if __name__ == "__main__":
    key = jax.random.PRNGKey(0)
    k1, k2, k3, k4, k5 = jax.random.split(key, 5)

    pos_gamma, neg_gamma, adv_temp = 6.0, 6.0, 1.0

    # Case 1: subsampling weights + adversarial sampling (main training path).
    B, NUM_NEG = 8, 15                 # similarity: [8, 16]
    similarity = jax.random.normal(k1, (B, 1 + NUM_NEG), dtype=jnp.float32) * 3.0
    sw = jax.random.uniform(k2, (B,), dtype=jnp.float32, minval=0.5, maxval=1.5)

    loss, loss_record = sigmoid_loss(
        similarity, subsampling_weight=sw,
        pos_gamma=pos_gamma, neg_gamma=neg_gamma, adv_temperature=adv_temp)
    loss = jax.block_until_ready(loss)
    ref = jax.block_until_ready(
        _reference(similarity, sw, pos_gamma, neg_gamma, adv_temp))
    # tolerance accounts for the approx EUP reciprocal in the softmax (~1e-4 rel)
    assert jnp.allclose(loss, ref, atol=2e-3, rtol=2e-3), (loss, ref)

    # Same path under jax.jit (no host syncs in the wrapper).
    jloss, jrec = jax.jit(
        lambda s, w: sigmoid_loss(s, w, pos_gamma=pos_gamma,
                                  neg_gamma=neg_gamma,
                                  adv_temperature=adv_temp))(similarity, sw)
    jloss = jax.block_until_ready(jloss)
    assert jnp.allclose(jloss, ref, atol=2e-3, rtol=2e-3), (jloss, ref)

    # Case 2: unweighted, non-adversarial, margin flag, multi-chunk grid with a
    # phantom tile (B=20 over 8-row tiles -> 3 tiles -> 2 chunks x 2 steps).
    B2, NN2 = 20, 15
    sim2 = jax.random.normal(k3, (B2, 1 + NN2), dtype=jnp.float32) * 3.0
    loss2, _ = sigmoid_loss(sim2, pos_gamma=pos_gamma, neg_gamma=neg_gamma,
                            small_better=True, block_batch=8)
    loss2 = jax.block_until_ready(loss2)
    ref2 = jax.block_until_ready(
        _reference(sim2, None, pos_gamma, neg_gamma, None, small_better=True))
    assert jnp.allclose(loss2, ref2, atol=2e-3, rtol=2e-3), (loss2, ref2)

    # Case 3: adversarial + weights + row masking on a multi-chunk grid.
    B3, NN3 = 20, 7
    sim3 = jax.random.normal(k4, (B3, 1 + NN3), dtype=jnp.float32) * 4.0
    sw3 = jax.random.uniform(k5, (B3,), dtype=jnp.float32, minval=0.5, maxval=1.5)
    loss3, _ = sigmoid_loss(sim3, subsampling_weight=sw3,
                            pos_gamma=pos_gamma, neg_gamma=neg_gamma,
                            adv_temperature=adv_temp, add=True, block_batch=8)
    loss3 = jax.block_until_ready(loss3)
    ref3 = jax.block_until_ready(
        _reference(sim3, sw3, pos_gamma, neg_gamma, adv_temp, add=True))
    assert jnp.allclose(loss3, ref3, atol=2e-3, rtol=2e-3), (loss3, ref3)

    print("KERNEL_OK")
</pallas_src>

<mosaic_0001>
module attributes {stable_mosaic.version = 11 : i64} {
  func.func @_sigmoid_loss_kernel(%arg0: i32, %arg1: i32, %arg2: memref<8x16xf32, #tpu.memory_space<vmem>>, %arg3: memref<8x1xf32, #tpu.memory_space<vmem>>, %arg4: memref<8x128xf32, #tpu.memory_space<vmem>>, %arg5: memref<3xf32, #tpu.memory_space<smem>>) attributes {dimension_semantics = [#tpu.dimension_semantics<parallel>, #tpu.dimension_semantics<arbitrary>], iteration_bounds = array<i64: 1, 1>, scalar_prefetch = 0 : i64, scratch_operands = 1 : i64, tpu.core_type = #tpu.core_type<tc>, window_params = [{transform_indices = @transform_0, window_bounds = array<i64: 8, 16>}, {transform_indices = @transform_1, window_bounds = array<i64: 8, 1>}, {transform_indices = @transform_2, window_bounds = array<i64: 8, 128>}]} {
    %c0_i32 = arith.constant 0 : i32
    %0 = arith.cmpi eq, %arg1, %c0_i32 : i32
    %1 = arith.extui %0 : i1 to i32
    %c0_i32_0 = arith.constant 0 : i32
    %2 = arith.cmpi ne, %1, %c0_i32_0 : i32
    scf.if %2 {
      %cst_24 = arith.constant 0.000000e+00 : f32
      %c0_25 = arith.constant 0 : index
      %73 = memref.load %arg5[%c0_25] : memref<3xf32, #tpu.memory_space<smem>>
      memref.store %cst_24, %arg5[%c0_25] : memref<3xf32, #tpu.memory_space<smem>>
      %cst_26 = arith.constant 0.000000e+00 : f32
      %c1_27 = arith.constant 1 : index
      %74 = memref.load %arg5[%c1_27] : memref<3xf32, #tpu.memory_space<smem>>
      memref.store %cst_26, %arg5[%c1_27] : memref<3xf32, #tpu.memory_space<smem>>
      %cst_28 = arith.constant 0.000000e+00 : f32
      %c2_29 = arith.constant 2 : index
      %75 = memref.load %arg5[%c2_29] : memref<3xf32, #tpu.memory_space<smem>>
      memref.store %cst_28, %arg5[%c2_29] : memref<3xf32, #tpu.memory_space<smem>>
    } else {
    }
    %c0 = arith.constant 0 : index
    %c0_1 = arith.constant 0 : index
    %3 = vector.load %arg2[%c0, %c0_1] : memref<8x16xf32, #tpu.memory_space<vmem>>, vector<8x16xf32>
    %4 = vector.extract_strided_slice %3 {offsets = [0, 0], sizes = [8, 1], strides = [1, 1]} : vector<8x16xf32> to vector<8x1xf32>
    %5 = tpu.iota {dimensions = array<i32: 1>} : vector<8x16xi32>
    %c1_i32 = arith.constant 1 : i32
    %6 = vector.broadcast %c1_i32 : i32 to vector<8x16xi32>
    %7 = arith.cmpi sge, %5, %6 : vector<8x16xi32>
    %cst = arith.constant 0.000000e+00 : f32
    %8 = vector.broadcast %cst : f32 to vector<8x16xf32>
    %9 = arith.subf %8, %3 : vector<8x16xf32>
    %cst_2 = arith.constant 0.000000e+00 : f32
    %10 = vector.broadcast %cst_2 : f32 to vector<8x16xf32>
    %11 = arith.minimumf %9, %10 : vector<8x16xf32>
    %12 = math.absf %9 : vector<8x16xf32>
    %cst_3 = arith.constant 0.000000e+00 : f32
    %13 = vector.broadcast %cst_3 : f32 to vector<8x16xf32>
    %14 = arith.subf %13, %12 : vector<8x16xf32>
    %15 = math.exp %14 : vector<8x16xf32>
    %cst_4 = arith.constant 1.000000e+00 : f32
    %16 = vector.broadcast %cst_4 : f32 to vector<8x16xf32>
    %17 = arith.addf %16, %15 : vector<8x16xf32>
    %18 = math.log %17 : vector<8x16xf32>
    %19 = arith.subf %11, %18 : vector<8x16xf32>
    %cst_5 = arith.constant 1.000000e+00 : f32
    %20 = vector.broadcast %cst_5 : f32 to vector<8x16xf32>
    %21 = arith.mulf %3, %20 : vector<8x16xf32>
    %cst_6 = arith.constant 0xFF800000 : f32
    %22 = vector.broadcast %cst_6 : f32 to vector<8x16xf32>
    %23 = arith.select %7, %21, %22 : vector<8x16xi1>, vector<8x16xf32>
    %cst_7 = arith.constant dense<0xFF800000> : vector<8xf32>
    %24 = vector.multi_reduction <maximumf>, %23, %cst_7 [1] : vector<8x16xf32> to vector<8xf32>
    %25 = vector.shape_cast %24 : vector<8xf32> to vector<8x1xf32>
    %26 = vector.broadcast %25 : vector<8x1xf32> to vector<8x16xf32>
    %27 = arith.subf %23, %26 : vector<8x16xf32>
    %28 = math.exp %27 : vector<8x16xf32>
    %cst_8 = arith.constant dense<0.000000e+00> : vector<8xf32>
    %29 = vector.multi_reduction <add>, %28, %cst_8 [1] : vector<8x16xf32> to vector<8xf32>
    %30 = vector.shape_cast %29 : vector<8xf32> to vector<8x1xf32>
    %31 = arith.mulf %28, %19 : vector<8x16xf32>
    %cst_9 = arith.constant dense<0.000000e+00> : vector<8xf32>
    %32 = vector.multi_reduction <add>, %31, %cst_9 [1] : vector<8x16xf32> to vector<8xf32>
    %33 = vector.shape_cast %32 : vector<8xf32> to vector<8x1xf32>
    %34 = tpu.reciprocal %30 {approx = true} : vector<8x1xf32> -> vector<8x1xf32>
    %35 = arith.mulf %33, %34 : vector<8x1xf32>
    %cst_10 = arith.constant 0.000000e+00 : f32
    %36 = vector.broadcast %cst_10 : f32 to vector<8x1xf32>
    %37 = arith.minimumf %4, %36 : vector<8x1xf32>
    %38 = math.absf %4 : vector<8x1xf32>
    %cst_11 = arith.constant 0.000000e+00 : f32
    %39 = vector.broadcast %cst_11 : f32 to vector<8x1xf32>
    %40 = arith.subf %39, %38 : vector<8x1xf32>
    %41 = math.exp %40 : vector<8x1xf32>
    %cst_12 = arith.constant 1.000000e+00 : f32
    %42 = vector.broadcast %cst_12 : f32 to vector<8x1xf32>
    %43 = arith.addf %42, %41 : vector<8x1xf32>
    %44 = math.log %43 : vector<8x1xf32>
    %45 = arith.subf %37, %44 : vector<8x1xf32>
    %c0_13 = arith.constant 0 : index
    %c0_14 = arith.constant 0 : index
    %46 = vector.load %arg3[%c0_13, %c0_14] : memref<8x1xf32, #tpu.memory_space<vmem>>, vector<8x1xf32>
    %c2 = arith.constant 2 : index
    %47 = memref.load %arg5[%c2] : memref<3xf32, #tpu.memory_space<smem>>
    %48 = vector.shape_cast %46 : vector<8x1xf32> to vector<1x8x1xf32>
    %cst_15 = arith.constant dense<0.000000e+00> : vector<1xf32>
    %49 = vector.multi_reduction <add>, %48, %cst_15 [1, 2] : vector<1x8x1xf32> to vector<1xf32>
    %50 = vector.shape_cast %49 : vector<1xf32> to vector<1x1x1xf32>
    %51 = vector.extract %50[0, 0, 0] : f32 from vector<1x1x1xf32>
    %52 = arith.addf %47, %51 : f32
    %c2_16 = arith.constant 2 : index
    %53 = memref.load %arg5[%c2_16] : memref<3xf32, #tpu.memory_space<smem>>
    memref.store %52, %arg5[%c2_16] : memref<3xf32, #tpu.memory_space<smem>>
    %54 = arith.mulf %46, %45 : vector<8x1xf32>
    %55 = vector.shape_cast %54 : vector<8x1xf32> to vector<1x8x1xf32>
    %cst_17 = arith.constant dense<0.000000e+00> : vector<1xf32>
    %56 = vector.multi_reduction <add>, %55, %cst_17 [1, 2] : vector<1x8x1xf32> to vector<1xf32>
    %57 = vector.shape_cast %56 : vector<1xf32> to vector<1x1x1xf32>
    %58 = vector.extract %57[0, 0, 0] : f32 from vector<1x1x1xf32>
    %59 = arith.mulf %46, %35 : vector<8x1xf32>
    %60 = vector.shape_cast %59 : vector<8x1xf32> to vector<1x8x1xf32>
    %cst_18 = arith.constant dense<0.000000e+00> : vector<1xf32>
    %61 = vector.multi_reduction <add>, %60, %cst_18 [1, 2] : vector<1x8x1xf32> to vector<1xf32>
    %62 = vector.shape_cast %61 : vector<1xf32> to vector<1x1x1xf32>
    %63 = vector.extract %62[0, 0, 0] : f32 from vector<1x1x1xf32>
    %c0_19 = arith.constant 0 : index
    %64 = memref.load %arg5[%c0_19] : memref<3xf32, #tpu.memory_space<smem>>
    %65 = arith.addf %64, %58 : f32
    %c0_20 = arith.constant 0 : index
    %66 = memref.load %arg5[%c0_20] : memref<3xf32, #tpu.memory_space<smem>>
    memref.store %65, %arg5[%c0_20] : memref<3xf32, #tpu.memory_space<smem>>
    %c1 = arith.constant 1 : index
    %67 = memref.load %arg5[%c1] : memref<3xf32, #tpu.memory_space<smem>>
    %68 = arith.addf %67, %63 : f32
    %c1_21 = arith.constant 1 : index
    %69 = memref.load %arg5[%c1_21] : memref<3xf32, #tpu.memory_space<smem>>
    memref.store %68, %arg5[%c1_21] : memref<3xf32, #tpu.memory_space<smem>>
    %c0_i32_22 = arith.constant 0 : i32
    %70 = arith.cmpi eq, %arg1, %c0_i32_22 : i32
    %71 = arith.extui %70 : i1 to i32
    %c0_i32_23 = arith.constant 0 : i32
    %72 = arith.cmpi ne, %71, %c0_i32_23 : i32
    scf.if %72 {
      %73 = tpu.iota {dimensions = array<i32: 1>} : vector<8x128xi32>
      %74 = tpu.iota {dimensions = array<i32: 0>} : vector<8x128xi32>
      %c0_i32_24 = arith.constant 0 : i32
      %75 = vector.broadcast %c0_i32_24 : i32 to vector<8x128xi32>
      %76 = arith.cmpi eq, %74, %75 : vector<8x128xi32>
      %c0_i32_25 = arith.constant 0 : i32
      %77 = vector.broadcast %c0_i32_25 : i32 to vector<8x128xi32>
      %78 = arith.cmpi eq, %73, %77 : vector<8x128xi32>
      %79 = arith.andi %76, %78 : vector<8x128xi1>
      %c0_26 = arith.constant 0 : index
      %80 = memref.load %arg5[%c0_26] : memref<3xf32, #tpu.memory_space<smem>>
      %cst_27 = arith.constant 0.000000e+00 : f32
      %81 = vector.broadcast %80 : f32 to vector<8x128xf32>
      %82 = vector.broadcast %cst_27 : f32 to vector<8x128xf32>
      %83 = arith.select %79, %81, %82 : vector<8x128xi1>, vector<8x128xf32>
      %c1_i32_28 = arith.constant 1 : i32
      %84 = vector.broadcast %c1_i32_28 : i32 to vector<8x128xi32>
      %85 = arith.cmpi eq, %73, %84 : vector<8x128xi32>
      %86 = arith.andi %76, %85 : vector<8x128xi1>
      %c1_29 = arith.constant 1 : index
      %87 = memref.load %arg5[%c1_29] : memref<3xf32, #tpu.memory_space<smem>>
      %88 = vector.broadcast %87 : f32 to vector<8x128xf32>
      %89 = arith.select %86, %88, %83 : vector<8x128xi1>, vector<8x128xf32>
      %c2_i32 = arith.constant 2 : i32
      %90 = vector.broadcast %c2_i32 : i32 to vector<8x128xi32>
      %91 = arith.cmpi eq, %73, %90 : vector<8x128xi32>
      %92 = arith.andi %76, %91 : vector<8x128xi1>
      %c2_30 = arith.constant 2 : index
      %93 = memref.load %arg5[%c2_30] : memref<3xf32, #tpu.memory_space<smem>>
      %94 = vector.broadcast %93 : f32 to vector<8x128xf32>
      %95 = arith.select %92, %94, %89 : vector<8x128xi1>, vector<8x128xf32>
      %c0_31 = arith.constant 0 : index
      %c0_32 = arith.constant 0 : index
      %96 = vector.load %arg4[%c0_31, %c0_32] : memref<8x128xf32, #tpu.memory_space<vmem>>, vector<8x128xf32>
      tpu.vector_store %arg4[%c0_31, %c0_32], %95 {strides = array<i32>} : memref<8x128xf32, #tpu.memory_space<vmem>>, vector<8x128xf32>,
    } else {
    }
    return
  }
  func.func @transform_0(%arg0: i32, %arg1: i32) -> (i32, i32) {
    %c1_i32 = arith.constant 1 : i32
    %0 = arith.muli %arg0, %c1_i32 : i32
    %1 = arith.addi %0, %arg1 : i32
    %c0_i32 = arith.constant 0 : i32
    %2 = arith.minsi %1, %c0_i32 : i32
    %c0_i32_0 = arith.constant 0 : i32
    %c0_i32_1 = arith.constant 0 : i32
    return %2, %c0_i32_0 : i32, i32
  }
  func.func @transform_1(%arg0: i32, %arg1: i32) -> (i32, i32) {
    %c1_i32 = arith.constant 1 : i32
    %0 = arith.muli %arg0, %c1_i32 : i32
    %1 = arith.addi %0, %arg1 : i32
    %c0_i32 = arith.constant 0 : i32
    %2 = arith.minsi %1, %c0_i32 : i32
    %c0_i32_0 = arith.constant 0 : i32
    %c0_i32_1 = arith.constant 0 : i32
    return %2, %c0_i32_0 : i32, i32
  }
  func.func @transform_2(%arg0: i32, %arg1: i32) -> (i32, i32) {
    %c0_i32 = arith.constant 0 : i32
    %c0_i32_0 = arith.constant 0 : i32
    return %arg0, %c0_i32 : i32, i32
  }
}

</mosaic_0001>

<llo_original>
// kernel: tpu_custom_call.1
$region0: #{tpu_custom_call.1}
  #allocation0 [shape = 'u32[]', space=smem, size = 0x4, offset = 0x4, fixed_abs, tag = 'smem constant byte address 0x4 - core index']
  #allocation1 [shape = 'u32[144,128]{1,0:T(1,128)}', space=vmem, size = 0x12000, scoped, tag = 'internal scratch']
  #allocation2 [shape = 'f32[3]{0:T(128)}', space=smem, size = 0x200, scoped, tag = 'scratch operand']
  %s0 = inlined_call_operand.vmem [shape: f32[8,16], index: 0, kind: input, shape index: {}]
  %s1 = inlined_call_operand.vmem [shape: f32[8,1], index: 1, kind: input, shape index: {}]
  %s2 = inlined_call_operand.hbm [shape: f32[8,128], index: 2, kind: output, shape index: {}]
  %s3 = sld [smem:[#allocation0]]
  $region26: #{tpu_custom_call.1} parent=0
    _
  %s5 = ssub.s32 1, %s3
  %s6 = scalar_select 0, %s5, %s3
  $region1: #{tpu_custom_call.1} parent=0
    #allocation3 [shape = 'u8[4096]{0}', space=vmem, size = 0x1000, scoped, tag = 'output window, operand 0, single buffered']
    #allocation4 [shape = 's32[1]{0}', space=sflag, size = 0x4, scoped, tag = 'scoped memory for tpu_custom_call.1']
    %7 = vsyncpa [#allocation4], 0
    // Predicated region
    $region2: #{tpu_custom_call.1} parent=1 // pred_check
      _
    $region3: #{tpu_custom_call.1} parent=1 // pred_check_branch
      %9 = sbr.rel (0) target = $region5
    $region4: #{tpu_custom_call.1} parent=1 // pred_region
      %s10 = sadd.s32 0, 0
      %p11 = scmp.lt.s32.totalorder %s10, 0
      %s12 = scalar_select %p11, %s10, 0
      %p13 = scmp.lt.s32.totalorder %s12, 0
      %s14 = scalar_select %p13, %s12, 0
      %s15 = smul.addr %s14, 8
      %s16 = scalar_lea.vmem %s0, %s15
      %s17 = sadd.s32 0, 0
      %p18 = scmp.lt.s32.totalorder %s17, 0
      %s19 = scalar_select %p18, %s17, 0
    $region5: #{tpu_custom_call.1} parent=1 // pred_fallthru
      _
    // Predicated region
    $region6: #{tpu_custom_call.1} parent=1 // pred_check
      _
    $region7: #{tpu_custom_call.1} parent=1 // pred_check_branch
      %21 = sbr.rel (0) target = $region9
    $region8: #{tpu_custom_call.1} parent=1 // pred_region
      %s22 = sadd.s32 0, 0
      %p23 = scmp.lt.s32.totalorder %s22, 0
      %s24 = scalar_select %p23, %s22, 0
      %p25 = scmp.lt.s32.totalorder %s24, 0
      %s26 = scalar_select %p25, %s24, 0
      %s27 = smul.addr %s26, 8
      %s28 = scalar_lea.vmem %s1, %s27
      %s29 = sadd.s32 0, 0
      %p30 = scmp.lt.s32.totalorder %s29, 0
      %s31 = scalar_select %p30, %s29, 0
    $region9: #{tpu_custom_call.1} parent=1 // pred_fallthru
      _
    %s32 = sadd.s32 0, 0
    %p33 = scmp.lt.s32.totalorder %s32, 0
    %s34 = scalar_select %p33, %s32, 0
    %p35 = scmp.lt.s32.totalorder %s34, 0
    %s36 = scalar_select %p35, %s34, 0
    %s37 = smul.addr %s36, 8
    %s38 = scalar_lea.vmem %s0, %s37
    %s39 = sadd.s32 0, 0
    %p40 = scmp.lt.s32.totalorder %s39, 0
    %s41 = scalar_select %p40, %s39, 0
    %p42 = scmp.lt.s32.totalorder %s41, 0
    %s43 = scalar_select %p42, %s41, 0
    %s44 = smul.addr %s43, 8
    %s45 = scalar_lea.vmem %s1, %s44
    %s46 = sadd.s32 0, 0
    %p47 = scmp.lt.s32.totalorder %s46, 0
    %s48 = scalar_select %p47, %s46, 0
    %p49 = scmp.lt.s32.totalorder %s48, 0
    %s50 = scalar_select %p49, %s48, 0
    %s51 = smul.addr %s50, 8
    %s52 = scalar_lea.vmem %s0, %s51
    %s53 = sadd.s32 0, 0
    %p54 = scmp.lt.s32.totalorder %s53, 0
    %s55 = scalar_select %p54, %s53, 0
    %s56 = sadd.s32 0, 0
    %p57 = scmp.lt.s32.totalorder %s56, 0
    %s58 = scalar_select %p57, %s56, 0
    %p59 = scmp.lt.s32.totalorder %s58, 0
    %s60 = scalar_select %p59, %s58, 0
    %s61 = smul.addr %s60, 8
    %s62 = scalar_lea.vmem %s1, %s61
    %s63 = sadd.s32 0, 0
    %p64 = scmp.lt.s32.totalorder %s63, 0
    %s65 = scalar_select %p64, %s63, 0
    %p66 = scmp.eq.s32.totalorder 0, 0
    // Predicated region
    $region10: #{tpu_custom_call.1} parent=1 // pred_check
      %p67 = pneg %p66
    $region11: #{tpu_custom_call.1} parent=1 // pred_check_branch
      %69 = sbr.rel (%p67) target = $region13
    $region12: #{tpu_custom_call.1} parent=1 // pred_region
      %s70 = scalar_lea.smem [#allocation2], 0
      %71 = sst [smem:[%s70]] 0.0
      %s72 = scalar_lea.smem [#allocation2], 1
      %73 = sst [smem:[%s72]] 0.0
      %s74 = scalar_lea.smem [#allocation2], 2
      %75 = sst [smem:[%s74]] 0.0
    $region13: #{tpu_custom_call.1} parent=1 // pred_fallthru
      _
    %v76 = vld [vmem:[%s52] sm:$0xff]
    %v77 = vlaneseq
    %v78 = vand.u32 %v77, 127
    %vm79 = vcmp.ge.s32.totalorder %v78, 1
    %v80 = vsub.f32 0.0, %v76
    %v81 = vmin.f32 %v80, 0.0
    %v82 = vand.u32 2147483647, %v80
    %v83 = vsub.f32 0.0, %v82
    %v84 = vmul.f32 %v83, 1.442695
    %v85 = vpow.pop %v84
    %v86 = vadd.f32 %v85, 1.0
    %v87 = vlog2.pop %v86
    %v88 = vmul.f32 %v87, 0.6931472
    %v89 = vsub.f32 %v81, %v88
    %v90 = vsel %vm79, %v76, -inf
    %vm91 = vcmask 130048
    %v92 = vsel %vm91, %v90, -inf
    %93 = vmax.xlane.f32.xlu0 %v92
    %v94 = vpop.xlane.xlu0 %93
    %v95 = vsub.f32 %v90, %v94
    %v96 = vmul.f32 %v95, 1.442695
    %v97 = vpow.pop %v96
    %v98 = vsel %vm91, %v97, 0.0
    %99 = vadd.xlane.f32.xlu0 %v98
    %v100 = vpop.xlane.xlu0 %99
    %v101 = vmul.f32 %v97, %v89
    %v102 = vsel %vm91, %v101, 0.0
    %103 = vadd.xlane.f32.xlu0 %v102
    %v104 = vpop.xlane.xlu0 %103
    %v105 = vrcp.pop %v100
    %v106 = vmul.f32 %v104, %v105
    %v107 = vmin.f32 %v76, 0.0
    %v108 = vand.u32 2147483647, %v76
    %v109 = vsub.f32 0.0, %v108
    %v110 = vmul.f32 %v109, 1.442695
    %v111 = vpow.pop %v110
    %v112 = vadd.f32 %v111, 1.0
    %v113 = vlog2.pop %v112
    %v114 = vmul.f32 %v113, 0.6931472
    %v115 = vsub.f32 %v107, %v114
    %v116 = vld [vmem:[%s62] sm:$0xff]
    %s117 = sld [smem:[#allocation2 + $0x2]]
    %vm118 = vcmask 7168
    %v119 = vsel %vm118, %v116, 0.0
    %120 = vadd.xlane.f32.xlu0 %v119
    %v121 = vpop.xlane.xlu0 %120
    %v122 = vrot.slane %v121, 4
    %v123 = vadd.f32 %v121, %v122
    %v124 = vrot.slane %v123, 2
    %v125 = vadd.f32 %v123, %v124
    %v126 = vrot.slane %v125, 1
    %v127 = vadd.f32 %v125, %v126
    %s128 = vtos %v127
    %s129 = sadd.f32 %s117, %s128
    %s130 = scalar_lea.smem [#allocation2], 2
    %131 = sst [smem:[%s130]] %s129
    %v132 = vmul.f32 %v116, %v115
    %v133 = vsel %vm118, %v132, 0.0
    %134 = vadd.xlane.f32.xlu0 %v133
    %v135 = vpop.xlane.xlu0 %134
    %v136 = vrot.slane %v135, 4
    %v137 = vadd.f32 %v135, %v136
    %v138 = vrot.slane %v137, 2
    %v139 = vadd.f32 %v137, %v138
    %v140 = vrot.slane %v139, 1
    %v141 = vadd.f32 %v139, %v140
    %s142 = vtos %v141
    %v143 = vmul.f32 %v116, %v106
    %v144 = vsel %vm118, %v143, 0.0
    %145 = vadd.xlane.f32.xlu0 %v144
    %v146 = vpop.xlane.xlu0 %145
    %v147 = vrot.slane %v146, 4
    %v148 = vadd.f32 %v146, %v147
    %v149 = vrot.slane %v148, 2
    %v150 = vadd.f32 %v148, %v149
    %v151 = vrot.slane %v150, 1
    %v152 = vadd.f32 %v150, %v151
    %s153 = vtos %v152
    %s154 = sld [smem:[#allocation2]]
    %s155 = sadd.f32 %s154, %s142
    %s156 = scalar_lea.smem [#allocation2], 0
    %157 = sst [smem:[%s156]] %s155
    %s158 = sld [smem:[#allocation2 + $0x1]]
    %s159 = sadd.f32 %s158, %s153
    %s160 = scalar_lea.smem [#allocation2], 1
    %161 = sst [smem:[%s160]] %s159
    // Predicated region
    $region14: #{tpu_custom_call.1} parent=1 // pred_check
      %p162 = pneg %p66
    $region15: #{tpu_custom_call.1} parent=1 // pred_check_branch
      %164 = sbr.rel (%p162) target = $region17
    $region16: #{tpu_custom_call.1} parent=1 // pred_region
      %v165 = vlaneseq
      %v166 = vshrl.u32 %v165, 7
      %vm167 = vcmp.eq.s32.totalorder %v166, 0
      %vm168 = vcmp.eq.s32.totalorder %v78, 0
      %vm169 = vmand %vm167, %vm168
      %s170 = sld [smem:[#allocation2]]
      %v171 = vstv %s170
      %v172 = vsel %vm169, %v171, 0.0
      %vm173 = vcmp.eq.s32.totalorder %v78, 1
      %vm174 = vmand %vm167, %vm173
      %s175 = sld [smem:[#allocation2 + $0x1]]
      %v176 = vstv %s175
      %v177 = vsel %vm174, %v176, %v172
      %vm178 = vcmp.eq.s32.totalorder %v78, 2
      %vm179 = vmand %vm167, %vm178
      %s180 = sld [smem:[#allocation2 + $0x2]]
      %v181 = vstv %s180
      %v182 = vsel %vm179, %v181, %v177
      %183 = vst [vmem:[#allocation3] sm:$0xff] %v182
    $region17: #{tpu_custom_call.1} parent=1 // pred_fallthru
      _
    // Predicated region
    $region18: #{tpu_custom_call.1} parent=1 // pred_check
      _
    $region19: #{tpu_custom_call.1} parent=1 // pred_check_branch
      %185 = sbr.rel (0) target = $region21
    $region20: #{tpu_custom_call.1} parent=1 // pred_region
      %s187 = ssub.s32 128, 128
      %188 = vsyncadd [#allocation4], %s187
      %s190 = sshll.u32 [#allocation3], 4
      %s191 = int_to_ptr.vmem [resolvable:$true] %s190
      %193 = dma.vmem_to_hbm [thread:$0]  %s191, 128, %s2, [#allocation4]
    $region21: #{tpu_custom_call.1} parent=1 // pred_fallthru
      _
    // Predicated region
    $region22: #{tpu_custom_call.1} parent=1 // pred_check
      _
    $region23: #{tpu_custom_call.1} parent=1 // pred_check_branch
      %195 = sbr.rel (0) target = $region25
    $region24: #{tpu_custom_call.1} parent=1 // pred_region
      %196 = dma.done [#allocation4], 128
    $region25: #{tpu_custom_call.1} parent=1 // pred_fallthru
      _
    %197 = vsyncpa [#allocation4], 1

</llo_original>
